<compile_context>
chip_gen: v5e
topology: v5e:2x2
jax: 0.10.0
libtpu: 0.0.40
codegen_flags: <defaults>
</compile_context>

<pallas_src>
import functools

import jax
import jax.numpy as jnp
import numpy as np
from jax.experimental import pallas as pl
from jax.experimental.pallas import tpu as pltpu

_MIB = 1024 * 1024


def _bgsub_kernel(img_ref, comp_ref, out_ref):
    # Hot path: (tile_rows, K) @ (K, K) on the MXU, f32 accumulation.
    #
    # NOTE: this kernel must stay row-wise independent.  The last grid block
    # may contain garbage rows (partial-block masking); they are harmless only
    # because no output row reads any other input row.  Do not add cross-row
    # reductions here without revisiting the tiling.
    out_ref[...] = jnp.dot(
        img_ref[...], comp_ref[...], preferred_element_type=jnp.float32
    ).astype(out_ref.dtype)


def _round_up(x, m):
    return ((x + m - 1) // m) * m


def _vmem_capacity_bytes():
    # Generation-aware VMEM budget: v5e/v6e have 128 MiB per TensorCore,
    # v7x only 64 MiB.  If the query is unavailable, assume the smallest.
    try:
        return int(pltpu.get_tpu_info().vmem_capacity_bytes)
    except Exception:  # pragma: no cover - conservative fallback
        return 64 * _MIB


def _matmul_rows(x2d, comp, max_tile_rows, real_flops):
    """x2d: (rows, K) @ comp: (K, K) -> (rows, K), row-tiled Pallas call."""
    rows, k = x2d.shape
    vmem_cap = _vmem_capacity_bytes()

    # ~8 MiB per streaming buffer.  Double-buffered in + out tiles = 4 buffers
    # => ~32 MiB pipelined footprint: amortizes per-step overhead to <5% of
    # DMA time everywhere while staying well inside v7x's 64 MiB VMEM.
    per_buffer = min(8 * _MIB, (vmem_cap // 2) // 4)
    bytes_per_row = k * 4
    budget_rows = max(8, (per_buffer // bytes_per_row) // 8 * 8)

    # Force >= 2 (even) grid steps so ("parallel",) shards across v7x's two
    # TensorCores; a no-op on single-TC v5e/v6e.
    nsteps = max(2, pl.cdiv(rows, budget_rows))
    if nsteps % 2:
        nsteps += 1
    tile = _round_up(max(1, pl.cdiv(rows, nsteps)), 8)
    tile = min(tile, _round_up(max_tile_rows, 8), _round_up(rows, 8))
    tile = max(tile, 8)

    grid = (pl.cdiv(rows, tile),)

    tile_bytes = tile * bytes_per_row
    vmem_limit = int(
        min(vmem_cap * 3 // 4, max(32 * _MIB, 4 * tile_bytes + 8 * _MIB))
    )

    cost = pl.CostEstimate(
        flops=int(real_flops),
        transcendentals=0,
        bytes_accessed=2 * rows * k * 4 + k * k * 4,
    )

    return pl.pallas_call(
        _bgsub_kernel,
        out_shape=jax.ShapeDtypeStruct((rows, k), x2d.dtype),
        grid_spec=pltpu.PrefetchScalarGridSpec(
            num_scalar_prefetch=0,
            grid=grid,
            in_specs=[
                pl.BlockSpec((tile, k), lambda i: (i, 0)),
                pl.BlockSpec((k, k), lambda i: (0, 0)),
            ],
            out_specs=pl.BlockSpec((tile, k), lambda i: (i, 0)),
        ),
        compiler_params=pltpu.CompilerParams(
            dimension_semantics=("parallel",),
            vmem_limit_bytes=vmem_limit,
        ),
        cost_estimate=cost,
    )(x2d, comp)


@functools.partial(jax.jit, static_argnames=("max_tile_rows",))
def bgsub_forward(img, M, W, *, max_tile_rows=65536):
    """img: (N, H, W, C) float32; M, W: (C, C) float32."""
    n, h, w, c = img.shape
    rows = n * h * w

    # comp = relu(M * W): tiny (C, C), computed once outside the kernel.
    comp = jnp.maximum(M * W, 0.0)
    img2d = img.reshape(rows, c)  # contiguous NHWC flatten

    lane_dense = (c <= 128) and (128 % c == 0)
    if not lane_dense:
        # Lane-sparse channel counts (C doesn't divide 128 / C > 128): stock
        # XLA matmul beats a masked-partial-store Pallas kernel here.
        return jnp.matmul(img2d, comp).reshape(n, h, w, c)

    pack = 128 // c
    rows_main = (rows // pack) * pack
    comp_block = jnp.kron(jnp.eye(pack, dtype=comp.dtype), comp)

    outs = []
    if rows_main > 0:
        # Lane-packed fast path: `pack` image rows per 128-wide lane row, with
        # a block-diagonal comp so each packed row is transformed exactly and
        # independently (kron(eye(pack), comp) packing is exact).
        packed = img2d[:rows_main].reshape(rows_main // pack, pack * c)
        real_flops = 2 * rows_main * c * c  # un-inflated flops for the hint
        out_main = _matmul_rows(packed, comp_block, max_tile_rows, real_flops)
        outs.append(out_main.reshape(rows_main, c))
    if rows_main < rows:
        # < pack leftover rows: tiny XLA matmul.  Never pad the whole image
        # and never route it through a lane-sparse (rows, C) kernel.
        outs.append(jnp.matmul(img2d[rows_main:], comp))

    out2d = outs[0] if len(outs) == 1 else jnp.concatenate(outs, axis=0)
    return out2d.reshape(n, h, w, c)


def make_params(num_channels, seed=0):
    """Deterministic synthetic parameters matching the module's __init__."""
    rng = np.random.RandomState(seed)
    # A deterministic binary mask matrix (diag + first off-diagonals).
    mask = np.eye(num_channels, dtype=np.float32)
    mask += np.eye(num_channels, k=1, dtype=np.float32)
    mask += np.eye(num_channels, k=-1, dtype=np.float32)
    mask = np.clip(mask, 0.0, 1.0)

    W = rng.rand(num_channels, num_channels).astype(np.float32) * mask * 0.1
    W[0, 0] = 1.0
    return jnp.asarray(mask), jnp.asarray(W.astype(np.float32))


def _reference(img, M, W):
    comp = jnp.maximum(M * W, 0.0)
    return jnp.matmul(img, comp)


def _check(img, M, W):
    out = jax.block_until_ready(bgsub_forward(img, M, W))
    np.testing.assert_allclose(
        np.asarray(out), np.asarray(_reference(img, M, W)), rtol=1e-5, atol=1e-5
    )


if __name__ == "__main__":
    # C=8 (pack=16): fully packed path, rows = 512 (multiple of 16).
    num_channels = 8
    M, W = make_params(num_channels, seed=0)
    img = jax.random.uniform(
        jax.random.PRNGKey(0), (2, 16, 16, num_channels), dtype=jnp.float32
    )
    _check(img, M, W)

    # rows = 35: main (32 rows, packed Pallas path) + tail (3 rows, XLA).
    img_mt = jax.random.uniform(
        jax.random.PRNGKey(1), (1, 5, 7, num_channels), dtype=jnp.float32
    )
    _check(img_mt, M, W)

    # rows = 15 < pack: tail-only branch.
    img_tail = jax.random.uniform(
        jax.random.PRNGKey(2), (1, 3, 5, num_channels), dtype=jnp.float32
    )
    _check(img_tail, M, W)

    # C=4 (pack=32): alternative divisor of 128.
    M4, W4 = make_params(4, seed=1)
    img4 = jax.random.uniform(
        jax.random.PRNGKey(3), (2, 8, 8, 4), dtype=jnp.float32
    )
    _check(img4, M4, W4)

    # C=5 (doesn't divide 128): XLA fallback path.
    M5, W5 = make_params(5, seed=2)
    img5 = jax.random.uniform(
        jax.random.PRNGKey(4), (2, 4, 4, 5), dtype=jnp.float32
    )
    _check(img5, M5, W5)

    print("KERNEL_OK")
</pallas_src>

<mosaic_0001>
module attributes {stable_mosaic.version = 11 : i64} {
  func.func @_bgsub_kernel(%arg0: i32, %arg1: memref<16x128xf32, #tpu.memory_space<vmem>>, %arg2: memref<128x128xf32, #tpu.memory_space<vmem>>, %arg3: memref<16x128xf32, #tpu.memory_space<vmem>>) attributes {dimension_semantics = [#tpu.dimension_semantics<parallel>], iteration_bounds = array<i64: 2>, scalar_prefetch = 0 : i64, scratch_operands = 0 : i64, tpu.core_type = #tpu.core_type<tc>, window_params = [{transform_indices = @transform_0, window_bounds = array<i64: 16, 128>}, {pipeline_mode = #tpu.pipeline_mode<synchronous>, transform_indices = @transform_1, window_bounds = array<i64: 128, 128>}, {transform_indices = @transform_2, window_bounds = array<i64: 16, 128>}]} {
    %c0 = arith.constant 0 : index
    %c0_0 = arith.constant 0 : index
    %0 = vector.load %arg1[%c0, %c0_0] : memref<16x128xf32, #tpu.memory_space<vmem>>, vector<16x128xf32>
    %c0_1 = arith.constant 0 : index
    %c0_2 = arith.constant 0 : index
    %1 = vector.load %arg2[%c0_1, %c0_2] : memref<128x128xf32, #tpu.memory_space<vmem>>, vector<128x128xf32>
    %cst = arith.constant dense<0.000000e+00> : vector<16x128xf32>
    %2 = tpu.matmul %0, %1, %cst {dimension_numbers = #tpu.dot_dimension_numbers<[1], [0], [0], [1], [0, 0, 1, 1], [], []>} : vector<16x128xf32>, vector<128x128xf32>, vector<16x128xf32> -> vector<16x128xf32>
    %c0_3 = arith.constant 0 : index
    %c0_4 = arith.constant 0 : index
    %3 = vector.load %arg3[%c0_3, %c0_4] : memref<16x128xf32, #tpu.memory_space<vmem>>, vector<16x128xf32>
    tpu.vector_store %arg3[%c0_3, %c0_4], %2 {strides = array<i32>} : memref<16x128xf32, #tpu.memory_space<vmem>>, vector<16x128xf32>,
    return
  }
  func.func @transform_0(%arg0: i32) -> (i32, i32) {
    %c0_i32 = arith.constant 0 : i32
    %c0_i32_0 = arith.constant 0 : i32
    return %arg0, %c0_i32 : i32, i32
  }
  func.func @transform_1(%arg0: i32) -> (i32, i32) {
    %c0_i32 = arith.constant 0 : i32
    %c0_i32_0 = arith.constant 0 : i32
    %c0_i32_1 = arith.constant 0 : i32
    return %c0_i32, %c0_i32_0 : i32, i32
  }
  func.func @transform_2(%arg0: i32) -> (i32, i32) {
    %c0_i32 = arith.constant 0 : i32
    %c0_i32_0 = arith.constant 0 : i32
    return %arg0, %c0_i32 : i32, i32
  }
}

</mosaic_0001>

<llo_original>
// kernel: bgsub_forward.1
$region0: #{bgsub_forward.1}
  #allocation0 [shape = 'u32[]', space=smem, size = 0x4, offset = 0x4, fixed_abs, tag = 'smem constant byte address 0x4 - core index']
  #allocation1 [shape = 'u32[72,128]{1,0:T(1,128)}', space=vmem, size = 0x9000, scoped, tag = 'internal scratch']
  %s0 = inlined_call_operand.vmem [shape: f32[32,128], index: 0, kind: input, shape index: {}]
  %s1 = inlined_call_operand.vmem [shape: f32[128,128], index: 1, kind: input, shape index: {}]
  %s2 = inlined_call_operand.vmem [shape: f32[32,128], index: 2, kind: output, shape index: {}]
  %s3 = sld [smem:[#allocation0]]
  $region41: #{bgsub_forward.1} parent=0
    _
  %s5 = ssub.s32 1, %s3
  %s6 = scalar_select 0, %s5, %s3
  loop: start=0, step=1, limit=4
  $region2: #{bgsub_forward.1} parent=0 // loop_pre_header
    _
  $region3: #{bgsub_forward.1} parent=0 // loop_header
    %s8 = sphi 0, %s12
    %p9 = scmp.ge.s32.totalorder %s8, 4
    %s18 = sphi 0, %s20
    %s21 = sphi 0, %s18
    %s22 = sphi 0, %s21
    %s38 = sphi 0, %s22
    %s42 = sphi 0, %s42
    %s44 = sphi 0, %s42
    %s45 = sphi 0, %s44
    %s59 = sphi 0, %s45
    %s65 = sphi 0, %s67
    %s68 = sphi 0, %s65
    %s69 = sphi 0, %s68
    %s85 = sphi 0, %s69
  $region4: #{bgsub_forward.1} parent=0 // loop_header_branch
    %11 = sbr.rel (%p9) target = $region8
  $region5: #{bgsub_forward.1} parent=0 // loop_body
    %s13 = ssub.s32 %s8, 1
    %s14 = ssub.s32 %s8, 2
    %s15 = sadd.s32 %s8, 1
    %s16 = ssub.s32 %s8, %s15
    %p17 = scmp.eq.s32.totalorder %s16, 0
    %s19 = sadd.s32 %s18, 1
    %s20 = scalar_select %p17, %s18, %s19
    %p23 = pneg %p17
    %p24 = scmp.eq.s32.totalorder %s8, 1
    %p25 = por %p23, %p24
    %p26 = scmp.ne.s32.totalorder %s18, %s21
    %p27 = scmp.eq.s32.totalorder %s8, 0
    %p28 = por %p26, %p27
    %p29 = scmp.ne.s32.totalorder %s18, %s21
    %p30 = scmp.eq.s32.totalorder %s13, 1
    %p31 = por %p29, %p30
    %p32 = scmp.ne.s32.totalorder %s21, %s22
    %p33 = scmp.eq.s32.totalorder %s13, 0
    %p34 = por %p32, %p33
    %p35 = scmp.ne.s32.totalorder %s21, %s22
    %p36 = scmp.eq.s32.totalorder %s14, 1
    %p37 = por %p35, %p36
    %p39 = scmp.ne.s32.totalorder %s22, %s38
    %p40 = scmp.eq.s32.totalorder %s14, 0
    %p41 = por %p39, %p40
    %s43 = sadd.s32 %s42, 1
    %p46 = scmp.eq.s32.totalorder %s8, 1
    %p47 = scmp.ne.s32.totalorder %s42, %s44
    %p48 = scmp.eq.s32.totalorder %s8, 0
    %p49 = por %p47, %p48
    %p50 = scmp.ne.s32.totalorder %s42, %s44
    %p51 = scmp.eq.s32.totalorder %s13, 1
    %p52 = por %p50, %p51
    %p53 = scmp.ne.s32.totalorder %s44, %s45
    %p54 = scmp.eq.s32.totalorder %s13, 0
    %p55 = por %p53, %p54
    %p56 = scmp.ne.s32.totalorder %s44, %s45
    %p57 = scmp.eq.s32.totalorder %s14, 1
    %p58 = por %p56, %p57
    %p60 = scmp.ne.s32.totalorder %s45, %s59
    %p61 = scmp.eq.s32.totalorder %s14, 0
    %p62 = por %p60, %p61
    %s63 = ssub.s32 %s8, %s15
    %p64 = scmp.eq.s32.totalorder %s63, 0
    %s66 = sadd.s32 %s65, 1
    %s67 = scalar_select %p64, %s65, %s66
    %p70 = pneg %p64
    %p71 = scmp.eq.s32.totalorder %s8, 1
    %p72 = por %p70, %p71
    %p73 = scmp.ne.s32.totalorder %s65, %s68
    %p74 = scmp.eq.s32.totalorder %s8, 0
    %p75 = por %p73, %p74
    %p76 = scmp.ne.s32.totalorder %s65, %s68
    %p77 = scmp.eq.s32.totalorder %s13, 1
    %p78 = por %p76, %p77
    %p79 = scmp.ne.s32.totalorder %s68, %s69
    %p80 = scmp.eq.s32.totalorder %s13, 0
    %p81 = por %p79, %p80
    %p82 = scmp.ne.s32.totalorder %s68, %s69
    %p83 = scmp.eq.s32.totalorder %s14, 1
    %p84 = por %p82, %p83
    %p86 = scmp.ne.s32.totalorder %s69, %s85
    %p87 = scmp.eq.s32.totalorder %s14, 0
    %p88 = por %p86, %p87
    %p89 = scmp.le.s32.totalorder 1, %s8
    %p90 = scmp.lt.s32.totalorder %s8, 3
    %p91 = pnand %p89, %p90
    %p92 = pneg %p91
    // Predicated region
    $region9: #{bgsub_forward.1} parent=5 // pred_check
      _
    $region10: #{bgsub_forward.1} parent=5 // pred_check_branch
      %94 = sbr.rel (%p91) target = $region12
    $region11: #{bgsub_forward.1} parent=5 // pred_region
      %s95 = ssub.s32 %s8, 1
      // Predicated region
      $region13: #{bgsub_forward.1} parent=11 // pred_check
        %p96 = pneg %p55
      $region14: #{bgsub_forward.1} parent=11 // pred_check_branch
        %98 = sbr.rel (%p96) target = $region16
      $region15: #{bgsub_forward.1} parent=11 // pred_region
        _
      $region16: #{bgsub_forward.1} parent=11 // pred_fallthru
        _
    $region12: #{bgsub_forward.1} parent=5 // pred_fallthru
      _
    %p99 = scmp.lt.s32.totalorder %s8, 2
    // Predicated region
    $region17: #{bgsub_forward.1} parent=5 // pred_check
      %p100 = pneg %p99
    $region18: #{bgsub_forward.1} parent=5 // pred_check_branch
      %102 = sbr.rel (%p100) target = $region20
    $region19: #{bgsub_forward.1} parent=5 // pred_region
      // Predicated region
      $region21: #{bgsub_forward.1} parent=19 // pred_check
        %p103 = pneg %p28
      $region22: #{bgsub_forward.1} parent=19 // pred_check_branch
        %105 = sbr.rel (%p103) target = $region24
      $region23: #{bgsub_forward.1} parent=19 // pred_region
        %s106 = smul.u32 2, %s8
        %p107 = scmp.lt.s32.totalorder %s106, 3
        %s108 = scalar_select %p107, %s106, 3
        %s109 = smul.addr %s108, 8
        %s110 = scalar_lea.vmem %s0, %s109
        %s111 = smul.u32 2, %s8
      $region24: #{bgsub_forward.1} parent=19 // pred_fallthru
        _
    $region20: #{bgsub_forward.1} parent=5 // pred_fallthru
      _
    %p112 = scmp.le.s32.totalorder 1, %s8
    %p113 = scmp.lt.s32.totalorder %s8, 3
    %p114 = pnand %p112, %p113
    %p115 = pneg %p114
    // Predicated region
    $region25: #{bgsub_forward.1} parent=5 // pred_check
      _
    $region26: #{bgsub_forward.1} parent=5 // pred_check_branch
      %117 = sbr.rel (%p114) target = $region28
    $region27: #{bgsub_forward.1} parent=5 // pred_region
      %s118 = ssub.s32 %s8, 1
      %s119 = smul.u32 2, %s13
      %p120 = scmp.lt.s32.totalorder %s119, 3
      %s121 = scalar_select %p120, %s119, 3
      %s122 = smul.addr %s121, 8
      %s123 = scalar_lea.vmem %s0, %s122
      %p124 = pneg %p34
      %p125 = pneg %p31
      %p126 = pneg %p55
      %p127 = pneg %p52
      %p128 = pneg %p81
      %p129 = pneg %p78
      %s130 = smul.u32 2, %s13
      %p131 = scmp.lt.s32.totalorder %s130, 3
      %s132 = scalar_select %p131, %s130, 3
      %s133 = smul.addr %s132, 8
      %s134 = scalar_lea.vmem %s2, %s133
      %s135 = smul.u32 2, %s13
      %p136 = scmp.lt.s32.totalorder %s135, 3
      %s137 = scalar_select %p136, %s135, 3
      %s138 = smul.addr %s137, 8
      %s139 = scalar_lea.vmem %s0, %s138
      %s140 = smul.u32 2, %s13
      %s141 = smul.u32 2, %s13
      %p142 = scmp.lt.s32.totalorder %s141, 3
      %s143 = scalar_select %p142, %s141, 3
      %s144 = smul.addr %s143, 8
      %s145 = scalar_lea.vmem %s2, %s144
      %s146 = smul.u32 2, %s13
      %v147 = vld [vmem:[%s139] sm:$0xff]
      %v148 = vld [vmem:[%s139 + $0x8] sm:$0xff]
      %v149 = vld [vmem:[%s1] sm:$0xff]
      %v150 = vld [vmem:[%s1 + $0x8] sm:$0xff]
      %v151 = vld [vmem:[%s1 + $0x10] sm:$0xff]
      %v152 = vld [vmem:[%s1 + $0x18] sm:$0xff]
      %v153 = vld [vmem:[%s1 + $0x20] sm:$0xff]
      %v154 = vld [vmem:[%s1 + $0x28] sm:$0xff]
      %v155 = vld [vmem:[%s1 + $0x30] sm:$0xff]
      %v156 = vld [vmem:[%s1 + $0x38] sm:$0xff]
      %v157 = vld [vmem:[%s1 + $0x40] sm:$0xff]
      %v158 = vld [vmem:[%s1 + $0x48] sm:$0xff]
      %v159 = vld [vmem:[%s1 + $0x50] sm:$0xff]
      %v160 = vld [vmem:[%s1 + $0x58] sm:$0xff]
      %v161 = vld [vmem:[%s1 + $0x60] sm:$0xff]
      %v162 = vld [vmem:[%s1 + $0x68] sm:$0xff]
      %v163 = vld [vmem:[%s1 + $0x70] sm:$0xff]
      %v164 = vld [vmem:[%s1 + $0x78] sm:$0xff]
      %165 = vmatpush.msra.mxu0 %v164
      %166 = vmatpush.msra.mxu0 %v163
      %167 = vmatpush.msra.mxu0 %v162
      %168 = vmatpush.msra.mxu0 %v161
      %169 = vmatpush.msra.mxu0 %v160
      %170 = vmatpush.msra.mxu0 %v159
      %171 = vmatpush.msra.mxu0 %v158
      %172 = vmatpush.msra.mxu0 %v157
      %173 = vmatpush.msra.mxu0 %v156
      %174 = vmatpush.msra.mxu0 %v155
      %175 = vmatpush.msra.mxu0 %v154
      %176 = vmatpush.msra.mxu0 %v153
      %177 = vmatpush.msra.mxu0 %v152
      %178 = vmatpush.msra.mxu0 %v151
      %179 = vmatpush.msra.mxu0 %v150
      %180 = vmatpush.msra.mxu0 %v149
      %181 = vmatmul.f32.gmra.mxu0 %v147
      %v182 = vpop.f32.mrf.mxu0
      %v183 = vadd.f32 0.0, %v182
      %184 = vmatmul.f32.gmra.mxu0 %v148
      %v185 = vpop.f32.mrf.mxu0
      %v186 = vadd.f32 0.0, %v185
      %187 = vdwg.mxu0
      %188 = vst [vmem:[%s145] sm:$0xff] %v183
      %189 = vst [vmem:[%s145 + $0x8] sm:$0xff] %v186
      %s190 = smul.u32 2, %s13
      %p191 = scmp.lt.s32.totalorder %s190, 3
      %s192 = scalar_select %p191, %s190, 3
      %s193 = smul.addr %s192, 8
      %s194 = scalar_lea.vmem %s2, %s193
      // Predicated region
      $region29: #{bgsub_forward.1} parent=27 // pred_check
        %p195 = pneg %p78
      $region30: #{bgsub_forward.1} parent=27 // pred_check_branch
        %197 = sbr.rel (%p195) target = $region32
      $region31: #{bgsub_forward.1} parent=27 // pred_region
        %s198 = smul.u32 2, %s13
      $region32: #{bgsub_forward.1} parent=27 // pred_fallthru
        _
    $region28: #{bgsub_forward.1} parent=5 // pred_fallthru
      _
    %p199 = scmp.le.s32.totalorder 2, %s8
    // Predicated region
    $region33: #{bgsub_forward.1} parent=5 // pred_check
      %p200 = pneg %p199
    $region34: #{bgsub_forward.1} parent=5 // pred_check_branch
      %202 = sbr.rel (%p200) target = $region36
    $region35: #{bgsub_forward.1} parent=5 // pred_region
      %s203 = ssub.s32 %s8, 2
      // Predicated region
      $region37: #{bgsub_forward.1} parent=35 // pred_check
        %p204 = pneg %p84
      $region38: #{bgsub_forward.1} parent=35 // pred_check_branch
        %206 = sbr.rel (%p204) target = $region40
      $region39: #{bgsub_forward.1} parent=35 // pred_region
        %s207 = smul.u32 2, %s14
        %p208 = scmp.lt.s32.totalorder %s207, 3
        %s209 = scalar_select %p208, %s207, 3
        %s210 = smul.addr %s209, 8
        %s211 = scalar_lea.vmem %s2, %s210
      $region40: #{bgsub_forward.1} parent=35 // pred_fallthru
        _
    $region36: #{bgsub_forward.1} parent=5 // pred_fallthru
      _
  $region6: #{bgsub_forward.1} parent=0 // loop_footer
    %s12 = sadd.s32 1, %s8
  $region7: #{bgsub_forward.1} parent=0 // loop_footer_branch
    %7 = sbr.rel target = $region3
  $region8: #{bgsub_forward.1} parent=0 // loop_exit
    _

</llo_original>
